<compile_context>
chip_gen: v5e
topology: v5e:2x2
jax: 0.10.0
libtpu: 0.0.40
codegen_flags: <defaults>
</compile_context>

<pallas_src>
import functools
import math

import jax
import jax.numpy as jnp
from jax import lax
from jax.experimental import pallas as pl
from jax.experimental.pallas import tpu as pltpu

_NEG_BIG = -1e30  # finite "masked" logit


def _qkv_proj_kernel(x_ref, w_ref, b_ref, mask_ref, q_ref, kv_ref, *, head_size):
    """Fused QKV projection for a (tr, E) row tile."""
    H = head_size
    x = x_ref[...].astype(jnp.bfloat16)                    # (tr, E) -> bf16 MXU feed
    # one (tr,E)x(E,3H) MXU pass, f32 accumulation, f32 bias add
    qkv = jnp.dot(x, w_ref[...], preferred_element_type=jnp.float32) + b_ref[...]

    tr = x.shape[0]
    ones = jnp.ones((tr, 1), jnp.float32)
    # 0 where the key is kept, -1e30 where padded; rides along as a K column
    kbias = jnp.where(mask_ref[...] != 0, 0.0, _NEG_BIG).astype(jnp.float32)

    q_aug = jnp.concatenate([qkv[:, :H], ones], axis=1)                       # (tr, H+1)
    kv_aug = jnp.concatenate([qkv[:, H:2 * H], kbias, qkv[:, 2 * H:]], axis=1)  # (tr, 2H+1)

    q_ref[...] = q_aug.astype(q_ref.dtype)
    kv_ref[...] = kv_aug.astype(kv_ref.dtype)


def _flash_attn_kernel(q_ref, kv_ref, o_ref, m_sc, l_sc, acc_sc, *, head_size):
    """Online-softmax attention over one (b, q-tile, kv-tile) grid point."""
    H = head_size
    qi = pl.program_id(1)
    ki = pl.program_id(2)
    nk = pl.num_programs(2)

    tq = q_ref.shape[1]
    tk = kv_ref.shape[1]
    q_start = qi * tq
    k_start = ki * tk

    @pl.when(ki == 0)
    def _init():
        m_sc[...] = jnp.full_like(m_sc, -jnp.inf)
        l_sc[...] = jnp.zeros_like(l_sc)
        acc_sc[...] = jnp.zeros_like(acc_sc)

    # skip kv blocks that lie entirely above the causal diagonal
    @pl.when(k_start <= q_start + tq - 1)
    def _compute():
        q_aug = q_ref[0]                       # (tq, H+1) bf16 (scale + ones folded)
        kv = kv_ref[0]                         # (tk, 2H+1) bf16
        k_aug = kv[:, : H + 1]                 # (tk, H+1): [k, pad_bias]
        v = kv[:, H + 1:]                      # (tk, H)

        # scores already include the key-padding bias via the augmented column
        s = lax.dot_general(q_aug, k_aug, (((1,), (1,)), ((), ())),
                            preferred_element_type=jnp.float32)   # (tq, tk) f32

        rows = q_start + lax.broadcasted_iota(jnp.int32, s.shape, 0)
        cols = k_start + lax.broadcasted_iota(jnp.int32, s.shape, 1)
        s = jnp.where(cols <= rows, s, _NEG_BIG)                  # causal mask

        m_prev = m_sc[...]
        m_new = jnp.maximum(m_prev, jnp.max(s, axis=-1, keepdims=True))
        alpha = jnp.exp(m_prev - m_new)
        p = jnp.exp(s - m_new)

        l_sc[...] = alpha * l_sc[...] + jnp.sum(p, axis=-1, keepdims=True)
        acc_sc[...] = alpha * acc_sc[...] + lax.dot_general(
            p.astype(jnp.bfloat16), v, (((1,), (0,)), ((), ())),
            preferred_element_type=jnp.float32)
        m_sc[...] = m_new

    @pl.when(ki == nk - 1)
    def _finalize():
        inv = pl.reciprocal(l_sc[...], approx=True)   # EUP, frees VALU slots
        o_ref[0] = (acc_sc[...] * inv).astype(o_ref.dtype)


def masked_self_attention(x, mask, wq, bq, wk, bk, wv, bv, *,
                          head_size, tq=None, tk=None):
    """x: (B,S,E) f32; mask: (B,S) int (nonzero=keep); weights (E,H); biases (H,)."""
    B, S, E = x.shape
    H = head_size
    scale = 1.0 / math.sqrt(H)

    # Fold the 1/sqrt(H) score scale into the query projection (zero kernel cost),
    # fuse the three projections into a single (E, 3H) weight, feed the MXU bf16.
    w_all = jnp.concatenate([wq * scale, wk, wv], axis=1).astype(jnp.bfloat16)  # (E, 3H)
    b_all = jnp.concatenate([bq * scale, bk, bv]).reshape(1, 3 * H).astype(jnp.float32)

    R = B * S
    x2d = x.reshape(R, E)
    mask2d = mask.reshape(R, 1).astype(jnp.int32)

    # ---------------- kernel 1: fused QKV projection over all B*S rows ----------
    tr = 512 if (R % 512 == 0 and R > 512) else R
    q2d, kv2d = pl.pallas_call(
        functools.partial(_qkv_proj_kernel, head_size=H),
        out_shape=(jax.ShapeDtypeStruct((R, H + 1), jnp.bfloat16),
                   jax.ShapeDtypeStruct((R, 2 * H + 1), jnp.bfloat16)),
        grid_spec=pltpu.PrefetchScalarGridSpec(
            num_scalar_prefetch=0,
            grid=(R // tr,),
            in_specs=[
                pl.BlockSpec((tr, E), lambda r: (r, 0)),          # x rows
                pl.BlockSpec((E, 3 * H), lambda r: (0, 0)),       # fused W (bf16)
                pl.BlockSpec((1, 3 * H), lambda r: (0, 0)),       # fused bias (f32)
                pl.BlockSpec((tr, 1), lambda r: (r, 0)),          # per-row key mask
            ],
            out_specs=(pl.BlockSpec((tr, H + 1), lambda r: (r, 0)),
                       pl.BlockSpec((tr, 2 * H + 1), lambda r: (r, 0))),
        ),
        compiler_params=pltpu.CompilerParams(dimension_semantics=("parallel",)),
    )(x2d, w_all, b_all, mask2d)

    q_aug = q2d.reshape(B, S, H + 1)
    kv_aug = kv2d.reshape(B, S, 2 * H + 1)

    # ---------------- kernel 2: flash-style masked attention --------------------
    if tq is None:
        tq = 128 if S % 128 == 0 else S
    if tk is None:
        tk = 128 if S % 128 == 0 else S
    assert S % tq == 0 and S % tk == 0, "tq/tk must divide S"
    assert (tq % 16 == 0 or tq == S) and (tk % 16 == 0 or tk == S), \
        "bf16 tiles need sublane counts that are multiples of 16 (or the full S)"

    grid = (B, S // tq, S // tk)
    out = pl.pallas_call(
        functools.partial(_flash_attn_kernel, head_size=H),
        out_shape=jax.ShapeDtypeStruct((B, S, H), x.dtype),
        grid_spec=pltpu.PrefetchScalarGridSpec(
            num_scalar_prefetch=0,
            grid=grid,
            in_specs=[
                pl.BlockSpec((1, tq, H + 1), lambda b, qi, ki: (b, qi, 0)),
                pl.BlockSpec((1, tk, 2 * H + 1), lambda b, qi, ki: (b, ki, 0)),
            ],
            out_specs=pl.BlockSpec((1, tq, H), lambda b, qi, ki: (b, qi, 0)),
            scratch_shapes=[
                pltpu.VMEM((tq, 1), jnp.float32),   # running max m
                pltpu.VMEM((tq, 1), jnp.float32),   # running denom l
                pltpu.VMEM((tq, H), jnp.float32),   # f32 accumulator
            ],
        ),
        compiler_params=pltpu.CompilerParams(
            dimension_semantics=("parallel", "parallel", "arbitrary")),
    )(q_aug, kv_aug)
    return out


def _reference(x, mask, wq, bq, wk, bk, wv, bv, head_size):
    q = x @ wq + bq
    k = x @ wk + bk
    v = x @ wv + bv
    scores = jnp.einsum("bqd,bkd->bqk", q, k) / jnp.sqrt(jnp.float32(head_size))
    S = x.shape[1]
    causal = jnp.tril(jnp.ones((S, S), dtype=bool))
    scores = jnp.where(causal[None], scores, -jnp.inf)
    scores = jnp.where(mask[:, None, :] != 0, scores, -jnp.inf)
    attn = jax.nn.softmax(scores, axis=-1)
    return jnp.einsum("bqk,bkd->bqd", attn, v)


if __name__ == "__main__":
    # small shapes consistent with the module; S=32 with tq=tk=16 exercises the
    # multi-block online-softmax / causal-skip path (grid = (2, 2, 2)).
    B, S = 2, 32
    embedding_size = 32
    head_size = 16

    key = jax.random.PRNGKey(0)
    kx, kq, kbq, kk, kbk, kvk, kbv = jax.random.split(key, 7)

    x = jax.random.normal(kx, (B, S, embedding_size), dtype=jnp.float32)

    bound = 1.0 / math.sqrt(embedding_size)
    wq = jax.random.uniform(kq, (embedding_size, head_size), jnp.float32, -bound, bound)
    bq = jax.random.uniform(kbq, (head_size,), jnp.float32, -bound, bound)
    wk = jax.random.uniform(kk, (embedding_size, head_size), jnp.float32, -bound, bound)
    bk = jax.random.uniform(kbk, (head_size,), jnp.float32, -bound, bound)
    wv = jax.random.uniform(kvk, (embedding_size, head_size), jnp.float32, -bound, bound)
    bv = jax.random.uniform(kbv, (head_size,), jnp.float32, -bound, bound)

    # padding mask: 1 = keep, 0 = masked out (earlier keys stay reachable -> no NaN rows)
    mask = jnp.ones((B, S), dtype=jnp.int32)
    mask = mask.at[1, S - 3:].set(0)

    out = masked_self_attention(x, mask, wq, bq, wk, bk, wv, bv,
                                head_size=head_size, tq=16, tk=16)
    out = jax.block_until_ready(out)

    ref = _reference(x, mask, wq, bq, wk, bk, wv, bv, head_size)
    assert out.shape == (B, S, head_size)
    # bf16 MXU operands (per perf review) -> loosened tolerance vs f32 reference
    assert jnp.allclose(out, ref, atol=5e-2, rtol=5e-2), (
        "mismatch vs reference: max abs err "
        f"{float(jnp.max(jnp.abs(out - ref))):.4e}")

    print("KERNEL_OK")
</pallas_src>

<mosaic_0001>
module attributes {stable_mosaic.version = 11 : i64} {
  func.func @_qkv_proj_kernel(%arg0: i32, %arg1: memref<64x32xf32, #tpu.memory_space<vmem>>, %arg2: memref<32x48xbf16, #tpu.memory_space<vmem>>, %arg3: memref<1x48xf32, #tpu.memory_space<vmem>>, %arg4: memref<64x1xi32, #tpu.memory_space<vmem>>, %arg5: memref<64x17xbf16, #tpu.memory_space<vmem>>, %arg6: memref<64x33xbf16, #tpu.memory_space<vmem>>) attributes {dimension_semantics = [#tpu.dimension_semantics<parallel>], iteration_bounds = array<i64: 1>, scalar_prefetch = 0 : i64, scratch_operands = 0 : i64, tpu.core_type = #tpu.core_type<tc>, window_params = [{transform_indices = @transform_0, window_bounds = array<i64: 64, 32>}, {pipeline_mode = #tpu.pipeline_mode<synchronous>, transform_indices = @transform_1, window_bounds = array<i64: 32, 48>}, {pipeline_mode = #tpu.pipeline_mode<synchronous>, transform_indices = @transform_2, window_bounds = array<i64: 1, 48>}, {transform_indices = @transform_3, window_bounds = array<i64: 64, 1>}, {transform_indices = @transform_4, window_bounds = array<i64: 64, 17>}, {transform_indices = @transform_5, window_bounds = array<i64: 64, 33>}]} {
    %c0 = arith.constant 0 : index
    %c0_0 = arith.constant 0 : index
    %0 = vector.load %arg1[%c0, %c0_0] : memref<64x32xf32, #tpu.memory_space<vmem>>, vector<64x32xf32>
    %1 = arith.truncf %0 : vector<64x32xf32> to vector<64x32xbf16>
    %c0_1 = arith.constant 0 : index
    %c0_2 = arith.constant 0 : index
    %2 = vector.load %arg2[%c0_1, %c0_2] : memref<32x48xbf16, #tpu.memory_space<vmem>>, vector<32x48xbf16>
    %cst = arith.constant dense<0.000000e+00> : vector<64x48xf32>
    %3 = tpu.matmul %1, %2, %cst {dimension_numbers = #tpu.dot_dimension_numbers<[1], [0], [0], [1], [0, 0, 1, 1], [], []>} : vector<64x32xbf16>, vector<32x48xbf16>, vector<64x48xf32> -> vector<64x48xf32>
    %c0_3 = arith.constant 0 : index
    %c0_4 = arith.constant 0 : index
    %4 = vector.load %arg3[%c0_3, %c0_4] : memref<1x48xf32, #tpu.memory_space<vmem>>, vector<1x48xf32>
    %5 = vector.broadcast %4 : vector<1x48xf32> to vector<64x48xf32>
    %6 = arith.addf %3, %5 : vector<64x48xf32>
    %cst_5 = arith.constant 1.000000e+00 : f32
    %7 = vector.broadcast %cst_5 : f32 to vector<64x1xf32>
    %c0_6 = arith.constant 0 : index
    %c0_7 = arith.constant 0 : index
    %8 = vector.load %arg4[%c0_6, %c0_7] : memref<64x1xi32, #tpu.memory_space<vmem>>, vector<64x1xi32>
    %c0_i32 = arith.constant 0 : i32
    %9 = vector.broadcast %c0_i32 : i32 to vector<64x1xi32>
    %10 = arith.cmpi ne, %8, %9 : vector<64x1xi32>
    %cst_8 = arith.constant 0.000000e+00 : f32
    %cst_9 = arith.constant -1.000000e+30 : f32
    %11 = vector.broadcast %cst_8 : f32 to vector<64x1xf32>
    %12 = vector.broadcast %cst_9 : f32 to vector<64x1xf32>
    %13 = arith.select %10, %11, %12 : vector<64x1xi1>, vector<64x1xf32>
    %14 = vector.extract_strided_slice %6 {offsets = [0, 0], sizes = [64, 16], strides = [1, 1]} : vector<64x48xf32> to vector<64x16xf32>
    %15 = tpu.concatenate %14, %7 in 1 : vector<64x16xf32>, vector<64x1xf32> -> vector<64x17xf32>
    %16 = vector.extract_strided_slice %6 {offsets = [0, 16], sizes = [64, 16], strides = [1, 1]} : vector<64x48xf32> to vector<64x16xf32>
    %17 = vector.extract_strided_slice %6 {offsets = [0, 32], sizes = [64, 16], strides = [1, 1]} : vector<64x48xf32> to vector<64x16xf32>
    %18 = tpu.concatenate %16, %13, %17 in 1 : vector<64x16xf32>, vector<64x1xf32>, vector<64x16xf32> -> vector<64x33xf32>
    %19 = arith.truncf %15 : vector<64x17xf32> to vector<64x17xbf16>
    %c0_10 = arith.constant 0 : index
    %c0_11 = arith.constant 0 : index
    %20 = vector.load %arg5[%c0_10, %c0_11] : memref<64x17xbf16, #tpu.memory_space<vmem>>, vector<64x17xbf16>
    tpu.vector_store %arg5[%c0_10, %c0_11], %19 {strides = array<i32>} : memref<64x17xbf16, #tpu.memory_space<vmem>>, vector<64x17xbf16>,
    %21 = arith.truncf %18 : vector<64x33xf32> to vector<64x33xbf16>
    %c0_12 = arith.constant 0 : index
    %c0_13 = arith.constant 0 : index
    %22 = vector.load %arg6[%c0_12, %c0_13] : memref<64x33xbf16, #tpu.memory_space<vmem>>, vector<64x33xbf16>
    tpu.vector_store %arg6[%c0_12, %c0_13], %21 {strides = array<i32>} : memref<64x33xbf16, #tpu.memory_space<vmem>>, vector<64x33xbf16>,
    return
  }
  func.func @transform_0(%arg0: i32) -> (i32, i32) {
    %c0_i32 = arith.constant 0 : i32
    %c0_i32_0 = arith.constant 0 : i32
    return %arg0, %c0_i32 : i32, i32
  }
  func.func @transform_1(%arg0: i32) -> (i32, i32) {
    %c0_i32 = arith.constant 0 : i32
    %c0_i32_0 = arith.constant 0 : i32
    %c0_i32_1 = arith.constant 0 : i32
    return %c0_i32, %c0_i32_0 : i32, i32
  }
  func.func @transform_2(%arg0: i32) -> (i32, i32) {
    %c0_i32 = arith.constant 0 : i32
    %c0_i32_0 = arith.constant 0 : i32
    %c0_i32_1 = arith.constant 0 : i32
    return %c0_i32, %c0_i32_0 : i32, i32
  }
  func.func @transform_3(%arg0: i32) -> (i32, i32) {
    %c0_i32 = arith.constant 0 : i32
    %c0_i32_0 = arith.constant 0 : i32
    return %arg0, %c0_i32 : i32, i32
  }
  func.func @transform_4(%arg0: i32) -> (i32, i32) {
    %c0_i32 = arith.constant 0 : i32
    %c0_i32_0 = arith.constant 0 : i32
    return %arg0, %c0_i32 : i32, i32
  }
  func.func @transform_5(%arg0: i32) -> (i32, i32) {
    %c0_i32 = arith.constant 0 : i32
    %c0_i32_0 = arith.constant 0 : i32
    return %arg0, %c0_i32 : i32, i32
  }
}

</mosaic_0001>

<llo_original>
// kernel: tpu_custom_call.1
$region0: #{tpu_custom_call.1}
  #allocation0 [shape = 'u32[]', space=smem, size = 0x4, offset = 0x4, fixed_abs, tag = 'smem constant byte address 0x4 - core index']
  #allocation1 [shape = 'u32[72,128]{1,0:T(1,128)}', space=vmem, size = 0x9000, scoped, tag = 'internal scratch']
  %s0 = inlined_call_operand.vmem [shape: f32[64,32], index: 0, kind: input, shape index: {}]
  %s1 = inlined_call_operand.vmem [shape: bf16[32,48], index: 1, kind: input, shape index: {}]
  %s2 = inlined_call_operand.vmem [shape: f32[1,48], index: 2, kind: input, shape index: {}]
  %s3 = inlined_call_operand.vmem [shape: s32[64,1], index: 3, kind: input, shape index: {}]
  %s4 = inlined_call_operand.vmem [shape: bf16[64,17], index: 4, kind: output, shape index: {0}]
  %s5 = inlined_call_operand.vmem [shape: bf16[64,33], index: 5, kind: output, shape index: {1}]
  %6 = xla_tuple %s4, %s5
  %s7 = sld [smem:[#allocation0]]
  $region34: #{tpu_custom_call.1} parent=0
    _
  %s9 = ssub.s32 1, %s7
  %s10 = scalar_select 0, %s9, %s7
  // Predicated region
  $region2: #{tpu_custom_call.1} parent=0 // pred_check
    _
  $region3: #{tpu_custom_call.1} parent=0 // pred_check_branch
    %12 = sbr.rel (0) target = $region5
  $region4: #{tpu_custom_call.1} parent=0 // pred_region
    _
  $region5: #{tpu_custom_call.1} parent=0 // pred_fallthru
    _
  // Predicated region
  $region6: #{tpu_custom_call.1} parent=0 // pred_check
    _
  $region7: #{tpu_custom_call.1} parent=0 // pred_check_branch
    %14 = sbr.rel (0) target = $region9
  $region8: #{tpu_custom_call.1} parent=0 // pred_region
    _
  $region9: #{tpu_custom_call.1} parent=0 // pred_fallthru
    _
  // Predicated region
  $region10: #{tpu_custom_call.1} parent=0 // pred_check
    _
  $region11: #{tpu_custom_call.1} parent=0 // pred_check_branch
    %16 = sbr.rel (0) target = $region13
  $region12: #{tpu_custom_call.1} parent=0 // pred_region
    _
  $region13: #{tpu_custom_call.1} parent=0 // pred_fallthru
    _
  // Predicated region
  $region14: #{tpu_custom_call.1} parent=0 // pred_check
    _
  $region15: #{tpu_custom_call.1} parent=0 // pred_check_branch
    %18 = sbr.rel (0) target = $region17
  $region16: #{tpu_custom_call.1} parent=0 // pred_region
    _
  $region17: #{tpu_custom_call.1} parent=0 // pred_fallthru
    _
  %v20 = vld [vmem:[%s0] sm:$0xff]
  %v21 = vld [vmem:[%s0 + $0x8] sm:$0xff]
  %v22 = vld [vmem:[%s0 + $0x10] sm:$0xff]
  %v23 = vld [vmem:[%s0 + $0x18] sm:$0xff]
  %v24 = vld [vmem:[%s0 + $0x20] sm:$0xff]
  %v25 = vld [vmem:[%s0 + $0x28] sm:$0xff]
  %v26 = vld [vmem:[%s0 + $0x30] sm:$0xff]
  %v27 = vld [vmem:[%s0 + $0x38] sm:$0xff]
  %v28 = vpack.c.bf16 %v21, %v20
  %v29 = vpack.c.bf16 %v23, %v22
  %v30 = vpack.c.bf16 %v25, %v24
  %v31 = vpack.c.bf16 %v27, %v26
  %v32 = vld [vmem:[%s1] sm:$0xf]
  %v33 = vld [vmem:[%s1 + $0x4] sm:$0xf]
  %v34 = vld [vmem:[%s1 + $0x8] sm:$0xf]
  %v35 = vld [vmem:[%s1 + $0xc] sm:$0xf]
  %v36 = vld [vmem:[%s2] sm:$0x1]
  %v38 = vperm.slane %v36, 0
  %v44 = vunpack.c.l.b16 %v32
  %v45 = vunpack.c.l.b16 %v33
  %v46 = vunpack.c.l.b16 %v34
  %v47 = vunpack.c.l.b16 %v35
  %v48 = vpack.c.b16 %v45, %v44
  %v49 = vpack.c.b16 %v47, %v46
  %vm52 = vcmask 261120
  %v54 = vsel %vm52, %v28, 0
  %v57 = vsel %vm52, %v29, 0
  %v60 = vsel %vm52, %v30, 0
  %v63 = vsel %vm52, %v31, 0
  %65 = vmatpush.bf16.msra.mxu0 0
  %66 = vmatpush.bf16.msra.mxu0 0
  %67 = vmatpush.bf16.msra.mxu0 0
  %68 = vmatpush.bf16.msra.mxu0 0
  %69 = vmatpush.bf16.msra.mxu0 0
  %70 = vmatpush.bf16.msra.mxu0 0
  %71 = vmatpush.bf16.msra.mxu0 %v49
  %72 = vmatpush.bf16.msra.mxu0 %v48
  %73 = vmatmul.bf16.gmra.mxu0 %v54
  %v74 = vpop.f32.mrf.mxu0
  %v75 = vadd.f32 %v38, %v74
  %v76 = vpop.f32.mrf.mxu0
  %v77 = vadd.f32 %v38, %v76
  %78 = vmatmul.bf16.gmra.mxu0 %v57
  %v79 = vpop.f32.mrf.mxu0
  %v80 = vadd.f32 %v38, %v79
  %v81 = vpop.f32.mrf.mxu0
  %v82 = vadd.f32 %v38, %v81
  %83 = vmatmul.bf16.gmra.mxu0 %v60
  %v84 = vpop.f32.mrf.mxu0
  %v85 = vadd.f32 %v38, %v84
  %v86 = vpop.f32.mrf.mxu0
  %v87 = vadd.f32 %v38, %v86
  %88 = vmatmul.bf16.gmra.mxu0 %v63
  %v89 = vpop.f32.mrf.mxu0
  %v90 = vadd.f32 %v38, %v89
  %v91 = vpop.f32.mrf.mxu0
  %v92 = vadd.f32 %v38, %v91
  %93 = vdwg.mxu0
  %v94 = vld [vmem:[%s3] sm:$0xff]
  %v95 = vld [vmem:[%s3 + $0x8] sm:$0xff]
  %v96 = vld [vmem:[%s3 + $0x10] sm:$0xff]
  %v97 = vld [vmem:[%s3 + $0x18] sm:$0xff]
  %v98 = vld [vmem:[%s3 + $0x20] sm:$0xff]
  %v99 = vld [vmem:[%s3 + $0x28] sm:$0xff]
  %v100 = vld [vmem:[%s3 + $0x30] sm:$0xff]
  %v101 = vld [vmem:[%s3 + $0x38] sm:$0xff]
  %vm102 = vcmp.ne.s32.totalorder %v94, 0
  %vm103 = vcmp.ne.s32.totalorder %v95, 0
  %vm104 = vcmp.ne.s32.totalorder %v96, 0
  %vm105 = vcmp.ne.s32.totalorder %v97, 0
  %vm106 = vcmp.ne.s32.totalorder %v98, 0
  %vm107 = vcmp.ne.s32.totalorder %v99, 0
  %vm108 = vcmp.ne.s32.totalorder %v100, 0
  %vm109 = vcmp.ne.s32.totalorder %v101, 0
  %v110 = vsel %vm102, 0.0, -1e+30
  %v111 = vsel %vm103, 0.0, -1e+30
  %v112 = vsel %vm104, 0.0, -1e+30
  %v113 = vsel %vm105, 0.0, -1e+30
  %v114 = vsel %vm106, 0.0, -1e+30
  %v115 = vsel %vm107, 0.0, -1e+30
  %v116 = vsel %vm108, 0.0, -1e+30
  %v117 = vsel %vm109, 0.0, -1e+30
  %vm118 = vcmask 130048
  %v119 = vsel %vm118, %v75, 1.0
  %v120 = vsel %vm118, %v77, 1.0
  %v121 = vsel %vm118, %v80, 1.0
  %v122 = vsel %vm118, %v82, 1.0
  %v123 = vsel %vm118, %v85, 1.0
  %v124 = vsel %vm118, %v87, 1.0
  %v125 = vsel %vm118, %v90, 1.0
  %v126 = vsel %vm118, %v92, 1.0
  %135 = vrot.lane.b32.xlu0 %v75, 112
  %v136 = vpop.permute.xlu0 %135
  %137 = vrot.lane.b32.xlu0 %v77, 112
  %v138 = vpop.permute.xlu0 %137
  %139 = vrot.lane.b32.xlu0 %v80, 112
  %v140 = vpop.permute.xlu0 %139
  %141 = vrot.lane.b32.xlu0 %v82, 112
  %v142 = vpop.permute.xlu0 %141
  %143 = vrot.lane.b32.xlu0 %v85, 112
  %v144 = vpop.permute.xlu0 %143
  %145 = vrot.lane.b32.xlu0 %v87, 112
  %v146 = vpop.permute.xlu0 %145
  %147 = vrot.lane.b32.xlu0 %v90, 112
  %v148 = vpop.permute.xlu0 %147
  %149 = vrot.lane.b32.xlu0 %v92, 112
  %v150 = vpop.permute.xlu0 %149
  %167 = vrot.lane.b32.xlu0 %v110, 16
  %v168 = vpop.permute.xlu0 %167
  %169 = vrot.lane.b32.xlu0 %v111, 16
  %v170 = vpop.permute.xlu0 %169
  %171 = vrot.lane.b32.xlu0 %v112, 16
  %v172 = vpop.permute.xlu0 %171
  %173 = vrot.lane.b32.xlu0 %v113, 16
  %v174 = vpop.permute.xlu0 %173
  %175 = vrot.lane.b32.xlu0 %v114, 16
  %v176 = vpop.permute.xlu0 %175
  %177 = vrot.lane.b32.xlu0 %v115, 16
  %v178 = vpop.permute.xlu0 %177
  %179 = vrot.lane.b32.xlu0 %v116, 16
  %v180 = vpop.permute.xlu0 %179
  %181 = vrot.lane.b32.xlu0 %v117, 16
  %v182 = vpop.permute.xlu0 %181
  %191 = vrot.lane.b32.xlu0 %v75, 113
  %v192 = vpop.permute.xlu0 %191
  %193 = vrot.lane.b32.xlu0 %v77, 113
  %v194 = vpop.permute.xlu0 %193
  %195 = vrot.lane.b32.xlu0 %v80, 113
  %v196 = vpop.permute.xlu0 %195
  %197 = vrot.lane.b32.xlu0 %v82, 113
  %v198 = vpop.permute.xlu0 %197
  %199 = vrot.lane.b32.xlu0 %v85, 113
  %v200 = vpop.permute.xlu0 %199
  %201 = vrot.lane.b32.xlu0 %v87, 113
  %v202 = vpop.permute.xlu0 %201
  %203 = vrot.lane.b32.xlu0 %v90, 113
  %v204 = vpop.permute.xlu0 %203
  %205 = vrot.lane.b32.xlu0 %v92, 113
  %v206 = vpop.permute.xlu0 %205
  %v215 = vsel %vm118, %v136, %v168
  %v216 = vsel %vm118, %v138, %v170
  %v217 = vsel %vm118, %v140, %v172
  %v218 = vsel %vm118, %v142, %v174
  %v219 = vsel %vm118, %v144, %v176
  %v220 = vsel %vm118, %v146, %v178
  %v221 = vsel %vm118, %v148, %v180
  %v222 = vsel %vm118, %v150, %v182
  %vm223 = vcmask 138240
  %v224 = vsel %vm223, %v215, %v192
  %v225 = vsel %vm223, %v216, %v194
  %v226 = vsel %vm223, %v217, %v196
  %v227 = vsel %vm223, %v218, %v198
  %v228 = vsel %vm223, %v219, %v200
  %v229 = vsel %vm223, %v220, %v202
  %v230 = vsel %vm223, %v221, %v204
  %v231 = vsel %vm223, %v222, %v206
  %v232 = vpack.c.bf16 %v119, %v119
  %v233 = vpack.c.bf16 %v120, %v120
  %v234 = vpack.c.bf16 %v121, %v121
  %v235 = vpack.c.bf16 %v122, %v122
  %v236 = vpack.c.bf16 %v123, %v123
  %v237 = vpack.c.bf16 %v124, %v124
  %v238 = vpack.c.bf16 %v125, %v125
  %v239 = vpack.c.bf16 %v126, %v126
  %vm240 = vcmask 134144
  %241 = vst.msk [vmem:[%s4] sm:$0xf] %vm240, %v232
  %242 = vst.msk [vmem:[%s4 + $0x4] sm:$0xf] %vm240, %v233
  %243 = vst.msk [vmem:[%s4 + $0x8] sm:$0xf] %vm240, %v234
  %244 = vst.msk [vmem:[%s4 + $0xc] sm:$0xf] %vm240, %v235
  %245 = vst.msk [vmem:[%s4 + $0x10] sm:$0xf] %vm240, %v236
  %246 = vst.msk [vmem:[%s4 + $0x14] sm:$0xf] %vm240, %v237
  %247 = vst.msk [vmem:[%s4 + $0x18] sm:$0xf] %vm240, %v238
  %248 = vst.msk [vmem:[%s4 + $0x1c] sm:$0xf] %vm240, %v239
  %v249 = vpack.c.bf16 %v224, %v224
  %v250 = vpack.c.bf16 %v225, %v225
  %v251 = vpack.c.bf16 %v226, %v226
  %v252 = vpack.c.bf16 %v227, %v227
  %v253 = vpack.c.bf16 %v228, %v228
  %v254 = vpack.c.bf16 %v229, %v229
  %v255 = vpack.c.bf16 %v230, %v230
  %v256 = vpack.c.bf16 %v231, %v231
  %vm257 = vcmask 265216
  %258 = vst.msk [vmem:[%s5] sm:$0xf] %vm257, %v249
  %259 = vst.msk [vmem:[%s5 + $0x4] sm:$0xf] %vm257, %v250
  %260 = vst.msk [vmem:[%s5 + $0x8] sm:$0xf] %vm257, %v251
  %261 = vst.msk [vmem:[%s5 + $0xc] sm:$0xf] %vm257, %v252
  %262 = vst.msk [vmem:[%s5 + $0x10] sm:$0xf] %vm257, %v253
  %263 = vst.msk [vmem:[%s5 + $0x14] sm:$0xf] %vm257, %v254
  %264 = vst.msk [vmem:[%s5 + $0x18] sm:$0xf] %vm257, %v255
  %265 = vst.msk [vmem:[%s5 + $0x1c] sm:$0xf] %vm257, %v256
  // Predicated region
  $region18: #{tpu_custom_call.1} parent=0 // pred_check
    _
  $region19: #{tpu_custom_call.1} parent=0 // pred_check_branch
    %267 = sbr.rel (0) target = $region21
  $region20: #{tpu_custom_call.1} parent=0 // pred_region
    _
  $region21: #{tpu_custom_call.1} parent=0 // pred_fallthru
    _
  // Predicated region
  $region22: #{tpu_custom_call.1} parent=0 // pred_check
    _
  $region23: #{tpu_custom_call.1} parent=0 // pred_check_branch
    %269 = sbr.rel (0) target = $region25
  $region24: #{tpu_custom_call.1} parent=0 // pred_region
    _
  $region25: #{tpu_custom_call.1} parent=0 // pred_fallthru
    _
  // Predicated region
  $region26: #{tpu_custom_call.1} parent=0 // pred_check
    _
  $region27: #{tpu_custom_call.1} parent=0 // pred_check_branch
    %271 = sbr.rel (0) target = $region29
  $region28: #{tpu_custom_call.1} parent=0 // pred_region
    _
  $region29: #{tpu_custom_call.1} parent=0 // pred_fallthru
    _
  // Predicated region
  $region30: #{tpu_custom_call.1} parent=0 // pred_check
    _
  $region31: #{tpu_custom_call.1} parent=0 // pred_check_branch
    %273 = sbr.rel (0) target = $region33
  $region32: #{tpu_custom_call.1} parent=0 // pred_region
    _
  $region33: #{tpu_custom_call.1} parent=0 // pred_fallthru
    _

</llo_original>
